<compile_context>
chip_gen: v7x
topology: tpu7x:2x2x1
jax: 0.10.0
libtpu: 0.0.40
codegen_flags: <defaults>
</compile_context>

<pallas_src>
import jax
import jax.numpy as jnp
from jax.experimental import pallas as pl
from jax.experimental.pallas import tpu as pltpu

_LANES = 512  # lane-dense last dim for the canonical slab (multiple of 128)


def _identity_kernel(x_ref, o_ref):
    # Pure pass-through on the current VMEM tile.
    o_ref[...] = x_ref[...]


def _sublane_multiple(itemsize: int) -> int:
    # Packed min-tile second-to-last dim: f32 -> 8, bf16 -> 16, int8/fp8 -> 32.
    return max(8, 32 // max(1, itemsize))


def _vmem_budget_bytes() -> int:
    """Generation-aware scoped-VMEM budget for this kernel."""
    try:
        cap = pltpu.get_tpu_info().vmem_capacity_bytes
    except Exception:
        cap = 64 * 1024 * 1024  # conservative: v7x per-TC physical VMEM
    # v5e/v6e (128 MiB physical) -> 64 MiB; v7x (64 MiB physical) -> 32 MiB.
    return min(64 * 1024 * 1024, cap // 2)


def _pick_row_tile(rows: int, row_bytes: int, sublane: int,
                   max_tile_bytes: int) -> int:
    """Largest row tile that divides `rows`, is a multiple of `sublane`,
    stays under `max_tile_bytes`, and leaves >= 2 grid programs (so both
    v7x TensorCores get work) whenever rows allow it."""
    if rows <= sublane:
        return rows
    tile = min(rows // 2, max(sublane, max_tile_bytes // row_bytes))
    tile -= tile % sublane
    tile = max(tile, sublane)
    while tile > sublane and rows % tile != 0:
        tile -= sublane
    return tile  # sublane always divides rows (slab is padded to it)


def _identity_copy_pallas(x: jax.Array) -> jax.Array:
    """Tuned Pallas identity copy of an arbitrarily shaped array."""
    if x.size == 0:
        return x

    orig_shape = x.shape
    dtype = x.dtype
    n = x.size

    sublane = _sublane_multiple(dtype.itemsize)
    block_elems = sublane * _LANES
    padded = pl.cdiv(n, block_elems) * block_elems

    # Canonicalize to a lane-dense 2-D slab (layout plumbing, not compute).
    flat = x.reshape(-1)
    if padded != n:
        flat = jnp.pad(flat, (0, padded - n))
    rows = padded // _LANES
    x2d = flat.reshape(rows, _LANES)

    budget = _vmem_budget_bytes()
    # 2 arrays x 2 pipeline buffers x tile, with ~2x headroom -> budget / 8.
    tile_r = _pick_row_tile(rows, _LANES * dtype.itemsize, sublane, budget // 8)
    grid = (rows // tile_r,)

    y2d = pl.pallas_call(
        _identity_kernel,
        out_shape=jax.ShapeDtypeStruct((rows, _LANES), dtype),
        grid=grid,
        in_specs=[pl.BlockSpec((tile_r, _LANES), lambda i: (i, 0))],
        out_specs=pl.BlockSpec((tile_r, _LANES), lambda i: (i, 0)),
        # Reuses the HBM allocation when the slab is donatable; DMA traffic
        # (full read + full write) is unchanged.
        input_output_aliases={0: 0},
        compiler_params=pltpu.CompilerParams(
            dimension_semantics=("parallel",),
            vmem_limit_bytes=budget,
        ),
    )(x2d)

    return y2d.reshape(-1)[:n].reshape(orig_shape)


def mlp_forward(x: jax.Array, use_pallas_kernel: bool = False) -> jax.Array:
    """Stand-in for MLP.forward.

    The reference forward is a no-op, so the default path launches no kernel
    at all (strictly faster than any tuned copy kernel).  Set
    `use_pallas_kernel=True` to route through the Pallas identity kernel.
    """
    if not use_pallas_kernel:
        return x
    return _identity_copy_pallas(x)


if __name__ == "__main__":
    key = jax.random.PRNGKey(0)
    k1, k2, k3 = jax.random.split(key, 3)

    # Shape consistent with a generic MLP input: (batch, channels, H, W).
    x_main = jax.random.normal(k1, (2, 4, 16, 16), dtype=jnp.float32)

    # 1) Default no-op path: no kernel launch, returns the input unchanged.
    y_fast = jax.block_until_ready(mlp_forward(x_main))
    assert y_fast.shape == x_main.shape and y_fast.dtype == x_main.dtype
    assert bool(jnp.array_equal(y_fast, x_main)), "no-op path mismatch"

    # 2) Pallas kernel path on the same input (flatten -> (rows, 512) slab).
    y_main = jax.block_until_ready(mlp_forward(x_main, use_pallas_kernel=True))
    assert bool(jnp.array_equal(y_main, x_main)), "identity mismatch (main)"

    # 3) bf16 input exercises the dtype-aware sublane multiple (16) and a
    #    >=2-program parallel grid.
    x_bf16 = jax.random.normal(k2, (64, 256), dtype=jnp.bfloat16)
    y_bf16 = jax.block_until_ready(mlp_forward(x_bf16, use_pallas_kernel=True))
    assert bool(jnp.array_equal(y_bf16, x_bf16)), "identity mismatch (bf16)"

    # 4) Ragged shape (rows not multiple of 8, cols not multiple of 128):
    #    handled via the lane-dense pad/flatten canonicalization, no masked
    #    partial stores and no full-array-block fallback.
    x_ragged = jax.random.normal(k3, (5, 130), dtype=jnp.float32)
    y_ragged = jax.block_until_ready(
        mlp_forward(x_ragged, use_pallas_kernel=True))
    assert bool(jnp.array_equal(y_ragged, x_ragged)), "identity mismatch (ragged)"

    print("KERNEL_OK")
</pallas_src>

<mosaic_0001>
module attributes {stable_mosaic.version = 11 : i64} {
  func.func @_identity_kernel(%arg0: i32, %arg1: memref<8x512xf32, #tpu.memory_space<vmem>>, %arg2: memref<8x512xf32, #tpu.memory_space<vmem>>) attributes {dimension_semantics = [#tpu.dimension_semantics<parallel>], iteration_bounds = array<i64: 1>, scalar_prefetch = 0 : i64, scratch_operands = 0 : i64, tpu.core_type = #tpu.core_type<tc>, window_params = [{transform_indices = @transform_0, window_bounds = array<i64: 8, 512>}, {transform_indices = @transform_1, window_bounds = array<i64: 8, 512>}]} {
    %c0 = arith.constant 0 : index
    %c0_0 = arith.constant 0 : index
    %0 = vector.load %arg1[%c0, %c0_0] : memref<8x512xf32, #tpu.memory_space<vmem>>, vector<8x512xf32>
    %c0_1 = arith.constant 0 : index
    %c0_2 = arith.constant 0 : index
    %1 = vector.load %arg2[%c0_1, %c0_2] : memref<8x512xf32, #tpu.memory_space<vmem>>, vector<8x512xf32>
    tpu.vector_store %arg2[%c0_1, %c0_2], %0 {strides = array<i32>} : memref<8x512xf32, #tpu.memory_space<vmem>>, vector<8x512xf32>,
    return
  }
  func.func @transform_0(%arg0: i32) -> (i32, i32) {
    %c0_i32 = arith.constant 0 : i32
    %c0_i32_0 = arith.constant 0 : i32
    return %arg0, %c0_i32 : i32, i32
  }
  func.func @transform_1(%arg0: i32) -> (i32, i32) {
    %c0_i32 = arith.constant 0 : i32
    %c0_i32_0 = arith.constant 0 : i32
    return %arg0, %c0_i32 : i32, i32
  }
}

</mosaic_0001>

<llo_original>
// kernel: tpu_custom_call.1
$region0: #{tpu_custom_call.1}
  #allocation0 [shape = 'u32[]', space=smem, size = 0x4, offset = 0x4, fixed_abs, tag = 'smem constant byte address 0x4 - core index']
  #allocation1 [shape = 'u32[144,128]{1,0:T(1,128)}', space=vmem, size = 0x12000, scoped, tag = 'internal scratch']
  %s0 = inlined_call_operand.hbm [shape: f32[8,512], index: 0, kind: input, shape index: {}, may-alias: {0,1}]
  %s1 = inlined_call_operand.hbm [shape: f32[8,512], index: 1, kind: output, shape index: {}, may-alias: {0,1}]
  %s2 = sld [smem:[#allocation0]]
  $region18: #{tpu_custom_call.1} parent=0
    _
  %s4 = ssub.s32 1, %s2
  %s5 = scalar_select 0, %s4, %s2
  $region1: #{tpu_custom_call.1} parent=0
    #allocation2 [shape = 'u8[16384]{0}', space=vmem, size = 0x4000, scoped, tag = 'input window, operand 0, single buffered']
    #allocation3 [shape = 's32[1]{0}', space=sflag, size = 0x4, scoped, tag = 'scoped memory for tpu_custom_call.1']
    #allocation4 [shape = 's32[1]{0}', space=sflag, size = 0x4, scoped, tag = 'scoped memory for tpu_custom_call.1']
    #allocation5 [shape = 'u8[16384]{0}', space=vmem, size = 0x4000, scoped, tag = 'output window, operand 0, single buffered']
    %6 = vsyncpa [#allocation3], 0
    %7 = vsyncpa [#allocation4], 0
    // Predicated region
    $region2: #{tpu_custom_call.1} parent=1 // pred_check
      _
    $region3: #{tpu_custom_call.1} parent=1 // pred_check_branch
      %9 = sbr.rel (0) target = $region5
    $region4: #{tpu_custom_call.1} parent=1 // pred_region
      %s11 = ssub.s32 512, 512
      %12 = vsyncadd [#allocation3], %s11
      %s14 = sshll.u32 [#allocation2], 4
      %s15 = int_to_ptr.vmem [resolvable:$true] %s14
      %17 = dma.hbm_to_vmem [thread:$0]  %s0, 512, %s15, [#allocation3]
    $region5: #{tpu_custom_call.1} parent=1 // pred_fallthru
      _
    // Predicated region
    $region6: #{tpu_custom_call.1} parent=1 // pred_check
      _
    $region7: #{tpu_custom_call.1} parent=1 // pred_check_branch
      %19 = sbr.rel (0) target = $region9
    $region8: #{tpu_custom_call.1} parent=1 // pred_region
      %20 = dma.done [#allocation3], 512
    $region9: #{tpu_custom_call.1} parent=1 // pred_fallthru
      _
    %v21 = vld [vmem:[#allocation2] sm:$0xff]
    %v22 = vld [vmem:[#allocation2 + $0x8] sm:$0xff]
    %v23 = vld [vmem:[#allocation2 + $0x10] sm:$0xff]
    %v24 = vld [vmem:[#allocation2 + $0x18] sm:$0xff]
    %25 = vst [vmem:[#allocation5] sm:$0xff] %v21
    %26 = vst [vmem:[#allocation5 + $0x8] sm:$0xff] %v22
    %27 = vst [vmem:[#allocation5 + $0x10] sm:$0xff] %v23
    %28 = vst [vmem:[#allocation5 + $0x18] sm:$0xff] %v24
    // Predicated region
    $region10: #{tpu_custom_call.1} parent=1 // pred_check
      _
    $region11: #{tpu_custom_call.1} parent=1 // pred_check_branch
      %30 = sbr.rel (0) target = $region13
    $region12: #{tpu_custom_call.1} parent=1 // pred_region
      %s32 = ssub.s32 512, 512
      %33 = vsyncadd [#allocation4], %s32
      %s35 = sshll.u32 [#allocation5], 4
      %s36 = int_to_ptr.vmem [resolvable:$true] %s35
      %38 = dma.vmem_to_hbm [thread:$0]  %s36, 512, %s1, [#allocation4]
    $region13: #{tpu_custom_call.1} parent=1 // pred_fallthru
      _
    // Predicated region
    $region14: #{tpu_custom_call.1} parent=1 // pred_check
      _
    $region15: #{tpu_custom_call.1} parent=1 // pred_check_branch
      %40 = sbr.rel (0) target = $region17
    $region16: #{tpu_custom_call.1} parent=1 // pred_region
      %41 = dma.done [#allocation4], 512
    $region17: #{tpu_custom_call.1} parent=1 // pred_fallthru
      _
    %42 = vsyncpa [#allocation3], 1
    %43 = vsyncpa [#allocation4], 1

</llo_original>
